<compile_context>
chip_gen: v7x
topology: tpu7x:2x2x1
jax: 0.10.0
libtpu: 0.0.40
codegen_flags: <defaults>
</compile_context>

<pallas_src>
import functools

import jax
import jax.numpy as jnp
from jax.experimental import pallas as pl
from jax.experimental.pallas import tpu as pltpu


def simam_kernel(x_ref, o_ref, *, inv_hw, inv_n, e_lambda):
    """SimAM attention on a (rows, H*W) tile; each row = one (b, c) slice."""
    x = x_ref[...].astype(jnp.float32)                       # (R, HW)

    # Per-row spatial mean (XLU cross-lane reduce), centered squares.
    mean = jnp.sum(x, axis=-1, keepdims=True) * inv_hw       # (R, 1)
    d = x - mean
    d2 = d * d                                               # (R, HW)

    # Per-row sum of squares -> single per-row scale (R divisions per tile).
    s = jnp.sum(d2, axis=-1, keepdims=True)                  # (R, 1)
    # 4.0 folded into the numerator; exact division keeps the 1e-4 tolerance.
    inv_denom = 0.25 / (s * inv_n + e_lambda)                # (R, 1)

    # Fused scale+shift, EUP sigmoid, elementwise gate.
    y = d2 * inv_denom + 0.5
    o_ref[...] = (x * jax.nn.sigmoid(y)).astype(o_ref.dtype)


def _vmem_capacity_bytes():
    """Physical VMEM capacity (falls back to the smallest current part)."""
    try:
        info = pltpu.get_tpu_info()
        cap = getattr(info, "vmem_capacity_bytes", None)
        if cap:
            return int(cap)
    except Exception:
        pass
    return 64 * 1024 * 1024  # conservative default (v7x per-core VMEM)


def _round_down8(v):
    return max(8, (v // 8) * 8)


def simam_forward(x_nchw, *, e_lambda=1e-4):
    """SimAM forward matching simam_module(e_lambda).forward.

    x_nchw : (N, C, H, W)   (PyTorch layout, any float dtype)
    returns (N, C, H, W)
    """
    N, C, H, W = x_nchw.shape
    HW = H * W
    BC = N * C
    n = max(HW - 1, 1)  # guard degenerate 1x1 maps (ref would divide by zero)

    # NCHW is already spatial-last -> pure reshape, no transpose / no HBM pass.
    x2 = x_nchw.reshape(BC, HW)

    # ---- generation-aware, byte-budgeted block sizing (mem-bound kernel) ----
    vmem_cap = _vmem_capacity_bytes()
    small_vmem = vmem_cap <= 64 * 1024 * 1024            # v7x-class parts
    block_budget = (4 if small_vmem else 8) * 1024 * 1024  # f32-block budget
    # Per grid step ~= 2x in + 2x out (double buffered) + ~3x f32 temporaries,
    # so total VMEM ~ 7x block_budget; keep headroom below the physical cap.
    vmem_limit = min((vmem_cap * 3) // 4, 96 * 1024 * 1024)

    row_bytes_f32 = HW * 4                 # budget against f32 temporaries
    budget_rows = _round_down8(block_budget // max(row_bytes_f32, 1))

    bc8 = ((BC + 7) // 8) * 8              # sublane rule: rows multiple of 8
    row_tile = min(budget_rows, bc8)
    if bc8 >= 16:
        # Keep >= 2 grid steps: DMA/compute pipelining everywhere, and lets
        # dimension_semantics=("parallel",) shard rows across v7x's 2 TCs.
        row_tile = min(row_tile, _round_down8(bc8 // 2))
    row_tile = max(8, row_tile)

    bc_padded = pl.cdiv(bc8, row_tile) * row_tile
    grid = (bc_padded // row_tile,)

    if bc_padded != BC:
        # Pad rows are all-zero: mean=0, d2=0, denom=4*e_lambda -> finite
        # output (== 0); padded rows are sliced off below.
        x2 = jnp.pad(x2, ((0, bc_padded - BC), (0, 0)))

    # TODO(synk): for huge spatial maps where even an 8-row block exceeds the
    # byte budget, a two-pass spatially-tiled variant (stats pass + normalize
    # pass) would be needed; not required at realistic feature-map sizes.

    kernel = functools.partial(
        simam_kernel, inv_hw=1.0 / HW, inv_n=1.0 / n, e_lambda=float(e_lambda))

    out = pl.pallas_call(
        kernel,
        out_shape=jax.ShapeDtypeStruct((bc_padded, HW), x_nchw.dtype),
        grid=grid,
        in_specs=[pl.BlockSpec((row_tile, HW), lambda i: (i, 0))],
        out_specs=pl.BlockSpec((row_tile, HW), lambda i: (i, 0)),
        compiler_params=pltpu.CompilerParams(
            dimension_semantics=("parallel",),
            vmem_limit_bytes=int(vmem_limit)),
    )(x2)

    return out[:BC].reshape(N, C, H, W)


def reference_forward(x, *, e_lambda=1e-4):
    """Plain-JAX reference of simam_module.forward."""
    _, _, h, w = x.shape
    n = w * h - 1
    mu = jnp.mean(x, axis=(2, 3), keepdims=True)
    xms = (x - mu) ** 2
    y = xms / (4.0 * (jnp.sum(xms, axis=(2, 3), keepdims=True) / n + e_lambda)) + 0.5
    return x * jax.nn.sigmoid(y)


if __name__ == "__main__":
    # simam_module(e_lambda=1e-4) on a small NCHW tensor.
    N, C, H, W = 2, 4, 16, 16
    e_lambda = 1e-4

    key = jax.random.PRNGKey(0)
    x = jax.random.normal(key, (N, C, H, W), jnp.float32)

    out = simam_forward(x, e_lambda=e_lambda)
    out = jax.block_until_ready(out)

    ref = reference_forward(x, e_lambda=e_lambda)
    assert out.shape == (N, C, H, W), out.shape
    assert jnp.allclose(out, ref, atol=1e-4, rtol=1e-4), float(
        jnp.max(jnp.abs(out - ref)))

    print("KERNEL_OK")
</pallas_src>

<mosaic_0001>
module attributes {stable_mosaic.version = 11 : i64} {
  func.func @simam_kernel(%arg0: i32, %arg1: memref<8x256xf32, #tpu.memory_space<vmem>>, %arg2: memref<8x256xf32, #tpu.memory_space<vmem>>) attributes {dimension_semantics = [#tpu.dimension_semantics<parallel>], iteration_bounds = array<i64: 1>, scalar_prefetch = 0 : i64, scratch_operands = 0 : i64, tpu.core_type = #tpu.core_type<tc>, window_params = [{transform_indices = @transform_0, window_bounds = array<i64: 8, 256>}, {transform_indices = @transform_1, window_bounds = array<i64: 8, 256>}]} {
    %c0 = arith.constant 0 : index
    %c0_0 = arith.constant 0 : index
    %0 = vector.load %arg1[%c0, %c0_0] : memref<8x256xf32, #tpu.memory_space<vmem>>, vector<8x256xf32>
    %cst = arith.constant dense<0.000000e+00> : vector<8xf32>
    %1 = vector.multi_reduction <add>, %0, %cst [1] : vector<8x256xf32> to vector<8xf32>
    %2 = vector.shape_cast %1 : vector<8xf32> to vector<8x1xf32>
    %cst_1 = arith.constant 3.906250e-03 : f32
    %3 = vector.broadcast %cst_1 : f32 to vector<8x1xf32>
    %4 = arith.mulf %2, %3 : vector<8x1xf32>
    %5 = vector.broadcast %4 : vector<8x1xf32> to vector<8x256xf32>
    %6 = arith.subf %0, %5 : vector<8x256xf32>
    %7 = arith.mulf %6, %6 : vector<8x256xf32>
    %cst_2 = arith.constant dense<0.000000e+00> : vector<8xf32>
    %8 = vector.multi_reduction <add>, %7, %cst_2 [1] : vector<8x256xf32> to vector<8xf32>
    %9 = vector.shape_cast %8 : vector<8xf32> to vector<8x1xf32>
    %cst_3 = arith.constant 0.00392156886 : f32
    %10 = vector.broadcast %cst_3 : f32 to vector<8x1xf32>
    %11 = arith.mulf %9, %10 : vector<8x1xf32>
    %cst_4 = arith.constant 9.99999974E-5 : f32
    %12 = vector.broadcast %cst_4 : f32 to vector<8x1xf32>
    %13 = arith.addf %11, %12 : vector<8x1xf32>
    %cst_5 = arith.constant 2.500000e-01 : f32
    %14 = vector.broadcast %cst_5 : f32 to vector<8x1xf32>
    %15 = arith.divf %14, %13 : vector<8x1xf32>
    %16 = vector.broadcast %15 : vector<8x1xf32> to vector<8x256xf32>
    %17 = arith.mulf %7, %16 : vector<8x256xf32>
    %cst_6 = arith.constant 5.000000e-01 : f32
    %18 = vector.broadcast %cst_6 : f32 to vector<8x256xf32>
    %19 = arith.addf %17, %18 : vector<8x256xf32>
    %20 = arith.negf %19 : vector<8x256xf32>
    %21 = math.exp %20 : vector<8x256xf32>
    %cst_7 = arith.constant 1.000000e+00 : f32
    %22 = vector.broadcast %cst_7 : f32 to vector<8x256xf32>
    %23 = arith.addf %22, %21 : vector<8x256xf32>
    %24 = arith.divf %22, %23 : vector<8x256xf32>
    %25 = arith.mulf %0, %24 : vector<8x256xf32>
    %c0_8 = arith.constant 0 : index
    %c0_9 = arith.constant 0 : index
    %26 = vector.load %arg2[%c0_8, %c0_9] : memref<8x256xf32, #tpu.memory_space<vmem>>, vector<8x256xf32>
    tpu.vector_store %arg2[%c0_8, %c0_9], %25 {strides = array<i32>} : memref<8x256xf32, #tpu.memory_space<vmem>>, vector<8x256xf32>,
    return
  }
  func.func @transform_0(%arg0: i32) -> (i32, i32) {
    %c0_i32 = arith.constant 0 : i32
    %c0_i32_0 = arith.constant 0 : i32
    return %arg0, %c0_i32 : i32, i32
  }
  func.func @transform_1(%arg0: i32) -> (i32, i32) {
    %c0_i32 = arith.constant 0 : i32
    %c0_i32_0 = arith.constant 0 : i32
    return %arg0, %c0_i32 : i32, i32
  }
}

</mosaic_0001>

<llo_original>
// kernel: tpu_custom_call.1
$region0: #{tpu_custom_call.1}
  #allocation0 [shape = 'u32[]', space=smem, size = 0x4, offset = 0x4, fixed_abs, tag = 'smem constant byte address 0x4 - core index']
  #allocation1 [shape = 'u32[144,128]{1,0:T(1,128)}', space=vmem, size = 0x12000, scoped, tag = 'internal scratch']
  %s0 = inlined_call_operand.hbm [shape: f32[8,256], index: 0, kind: input, shape index: {}]
  %s1 = inlined_call_operand.hbm [shape: f32[8,256], index: 1, kind: output, shape index: {}]
  %s2 = sld [smem:[#allocation0]]
  $region18: #{tpu_custom_call.1} parent=0
    _
  %s4 = ssub.s32 1, %s2
  %s5 = scalar_select 0, %s4, %s2
  $region1: #{tpu_custom_call.1} parent=0
    #allocation2 [shape = 'u8[8192]{0}', space=vmem, size = 0x2000, scoped, tag = 'input window, operand 0, single buffered']
    #allocation3 [shape = 's32[1]{0}', space=sflag, size = 0x4, scoped, tag = 'scoped memory for tpu_custom_call.1']
    #allocation4 [shape = 's32[1]{0}', space=sflag, size = 0x4, scoped, tag = 'scoped memory for tpu_custom_call.1']
    #allocation5 [shape = 'u8[8192]{0}', space=vmem, size = 0x2000, scoped, tag = 'output window, operand 0, single buffered']
    %6 = vsyncpa [#allocation3], 0
    %7 = vsyncpa [#allocation4], 0
    // Predicated region
    $region2: #{tpu_custom_call.1} parent=1 // pred_check
      _
    $region3: #{tpu_custom_call.1} parent=1 // pred_check_branch
      %9 = sbr.rel (0) target = $region5
    $region4: #{tpu_custom_call.1} parent=1 // pred_region
      %s11 = ssub.s32 256, 256
      %12 = vsyncadd [#allocation3], %s11
      %s14 = sshll.u32 [#allocation2], 4
      %s15 = int_to_ptr.vmem [resolvable:$true] %s14
      %17 = dma.hbm_to_vmem [thread:$0]  %s0, 256, %s15, [#allocation3]
    $region5: #{tpu_custom_call.1} parent=1 // pred_fallthru
      _
    // Predicated region
    $region6: #{tpu_custom_call.1} parent=1 // pred_check
      _
    $region7: #{tpu_custom_call.1} parent=1 // pred_check_branch
      %19 = sbr.rel (0) target = $region9
    $region8: #{tpu_custom_call.1} parent=1 // pred_region
      %20 = dma.done [#allocation3], 256
    $region9: #{tpu_custom_call.1} parent=1 // pred_fallthru
      _
    %v21 = vld [vmem:[#allocation2] sm:$0xff]
    %v22 = vld [vmem:[#allocation2 + $0x8] sm:$0xff]
    %v23 = vadd.f32 %v21, %v22
    %24 = vadd.xlane.f32.xlu0 %v23
    %v25 = vpop.xlane.xlu0 %24
    %v26 = vmul.f32 %v25, 0.00390625
    %v27 = vsub.f32 %v21, %v26
    %v28 = vsub.f32 %v22, %v26
    %v29 = vmul.f32 %v27, %v27
    %v30 = vmul.f32 %v28, %v28
    %v31 = vadd.f32 %v29, %v30
    %32 = vadd.xlane.f32.xlu0 %v31
    %v33 = vpop.xlane.xlu0 %32
    %v34 = vmul.f32 %v33, 0.003921569
    %v35 = vadd.f32 %v34, 0.0001
    %v36 = vrcp.pop %v35
    %v37 = vmul.f32 0.25, %v36
    %v38 = vmul.f32 %v29, %v37
    %v39 = vmul.f32 %v30, %v37
    %v40 = vadd.f32 %v38, 0.5
    %v41 = vadd.f32 %v39, 0.5
    %v42 = vxor.u32 %v40, 2147483648
    %v43 = vxor.u32 %v41, 2147483648
    %v44 = vmul.f32 %v42, 1.442695
    %v45 = vpow.pop %v44
    %v46 = vmul.f32 %v43, 1.442695
    %v47 = vpow.pop %v46
    %v48 = vadd.f32 %v45, 1.0
    %v49 = vadd.f32 %v47, 1.0
    %v50 = vrcp.pop %v48
    %v51 = vmul.f32 1.0, %v50
    %v52 = vrcp.pop %v49
    %v53 = vmul.f32 1.0, %v52
    %v54 = vmul.f32 %v21, %v51
    %v55 = vmul.f32 %v22, %v53
    %56 = vst [vmem:[#allocation5] sm:$0xff] %v54
    %57 = vst [vmem:[#allocation5 + $0x8] sm:$0xff] %v55
    // Predicated region
    $region10: #{tpu_custom_call.1} parent=1 // pred_check
      _
    $region11: #{tpu_custom_call.1} parent=1 // pred_check_branch
      %59 = sbr.rel (0) target = $region13
    $region12: #{tpu_custom_call.1} parent=1 // pred_region
      %s61 = ssub.s32 256, 256
      %62 = vsyncadd [#allocation4], %s61
      %s64 = sshll.u32 [#allocation5], 4
      %s65 = int_to_ptr.vmem [resolvable:$true] %s64
      %67 = dma.vmem_to_hbm [thread:$0]  %s65, 256, %s1, [#allocation4]
    $region13: #{tpu_custom_call.1} parent=1 // pred_fallthru
      _
    // Predicated region
    $region14: #{tpu_custom_call.1} parent=1 // pred_check
      _
    $region15: #{tpu_custom_call.1} parent=1 // pred_check_branch
      %69 = sbr.rel (0) target = $region17
    $region16: #{tpu_custom_call.1} parent=1 // pred_region
      %70 = dma.done [#allocation4], 256
    $region17: #{tpu_custom_call.1} parent=1 // pred_fallthru
      _
    %71 = vsyncpa [#allocation3], 1
    %72 = vsyncpa [#allocation4], 1

</llo_original>
